<compile_context>
chip_gen: v5e
topology: v5e:2x2
jax: 0.10.0
libtpu: 0.0.40
codegen_flags: <defaults>
</compile_context>

<pallas_src>
import functools

import jax
import jax.numpy as jnp
from jax.experimental import pallas as pl
from jax.experimental.pallas import tpu as pltpu

_SUBLANES = 8
_LANES = 128


def _tpu_layout():
    """Returns (num_tensorcores, double_buffer_budget_bytes, vmem_limit_bytes).

    v7x-class chips (<= 64 MiB physical VMEM per TC, 2 TCs) get conservative
    budgets; v5e/v6e-class chips (128 MiB physical VMEM, 1 TC) get larger ones
    and drop the core-split axis (avoids a wasted duplicate-tile fetch).
    Falls back to the conservative set if the query is unavailable — that
    choice is correct (just not optimal) on every generation.
    """
    vmem_phys = None
    try:
        info = pltpu.get_tpu_info()
        vmem_phys = int(getattr(info, "vmem_capacity_bytes", 0)) or None
    except Exception:  # noqa: BLE001 - hardware query is best-effort only
        vmem_phys = None
    if vmem_phys is not None and vmem_phys > (64 << 20):
        return 1, 48 << 20, 96 << 20      # v5e / v6e: single TC, big VMEM
    return 2, 24 << 20, 48 << 20          # v7x (or unknown): 2 TCs, 64 MiB VMEM


def _tsp_loss_a_kernel(side_ref, x0_ref, x1_ref, out_ref, *,
                       tiles_per_core, total_tiles, total_rows):
    p = pl.program_id(0)           # core-split axis ("parallel")
    i = pl.program_id(1)           # batch-tile axis ("arbitrary", accumulated)
    tb, c = x0_ref.shape
    tile_id = p * tiles_per_core + i

    # Output block index_map is constant along i -> block stays resident:
    # accumulate straight into it (no scratch, no final flush).
    @pl.when(i == 0)
    def _():
        out_ref[...] = jnp.zeros_like(out_ref)

    # Unpack the merged side stream: lane 0 = h = S - D (f32),
    # lane 1 = class index (int32 bits stashed in an f32 lane).
    h = side_ref[:, 0:1]                                       # (TB, 1) f32
    idx = pltpu.bitcast(side_ref[:, 1:2], jnp.int32)           # (TB, 1) i32

    # Fused masked gather: g = gather(X0 - X1, idx) == shallow_prob - deep_prob.
    col = jax.lax.broadcasted_iota(jnp.int32, (tb, c), 1)      # (TB, C)
    diff = x0_ref[...].astype(jnp.float32) - x1_ref[...].astype(jnp.float32)
    g = jnp.sum(jnp.where(col == idx, diff, jnp.float32(0.0)),
                axis=1, keepdims=True)                         # (TB, 1)

    # upper*(g>0) + down*(g<=0)  ==  where(g>0, g-h, h-g); then relu.
    per_row = jnp.maximum(jnp.where(g > 0, g - h, h - g), jnp.float32(0.0))

    # Mask ragged last-tile rows and the clamped duplicate tile on the short
    # core.  NOTE: must remain a true select (padded rows may hold NaN/garbage).
    row = jax.lax.broadcasted_iota(jnp.int32, (tb, 1), 0)
    valid = ((tile_id * tb + row) < total_rows) & (tile_id < total_tiles)
    per_row = jnp.where(valid, per_row, jnp.float32(0.0))

    out_ref[...] += jnp.sum(per_row)


def tsp_loss_a(output_S, output_D, X0, X1, targets):
    """Pallas implementation of TSP_Loss_A.forward. Returns scalar float32 loss."""
    B, C = X0.shape
    ncores, dbl_buf_budget, vmem_limit = _tpu_layout()

    # Wrapper glue: merge the two narrow per-row streams into one (B, 2) f32
    # array.  Lane 0: h = S - D.  Lane 1: int32 class index, bit-stashed.
    idx_i32 = targets[:, 2].astype(jnp.int32)
    h = (output_S.astype(jnp.float32) - output_D.astype(jnp.float32)).reshape(B, 1)
    idx_bits = jax.lax.bitcast_convert_type(idx_i32, jnp.float32).reshape(B, 1)
    side = jnp.concatenate([h, idx_bits], axis=1)              # (B, 2) f32

    # Batch-tile size: fill the double-buffer budget.  Per tile row:
    #   big streams : 2 inputs x 2 buffers x C x itemsize
    #   side stream : 1 input  x 2 buffers x 128 lanes (padded from 2) x 4 B
    x_itemsize = jnp.dtype(X0.dtype).itemsize
    pack = _SUBLANES * max(1, 4 // x_itemsize)   # 8 f32 / 16 bf16 / 32 int8
    per_row_bytes = 2 * 2 * C * x_itemsize + 2 * _LANES * 4
    tb = dbl_buf_budget // per_row_bytes
    tb = max(pack, (tb // pack) * pack)
    if B >= pack:
        tb = min(tb, (B // pack) * pack)
    tb = int(tb)

    total_tiles = max(1, -(-B // tb))
    tiles_per_core = -(-total_tiles // ncores)

    def x_map(p, i):
        # Clamp so the block start is always in-bounds; duplicate (clamped)
        # tiles are masked out inside the kernel.
        return (jnp.minimum(p * tiles_per_core + i, total_tiles - 1), 0)

    kernel = functools.partial(
        _tsp_loss_a_kernel,
        tiles_per_core=tiles_per_core,
        total_tiles=total_tiles,
        total_rows=B,
    )

    cost = pl.CostEstimate(
        flops=int(4 * B * C),
        transcendentals=0,
        bytes_accessed=int(2 * B * C * x_itemsize + B * 2 * 4
                           + ncores * _SUBLANES * _LANES * 4),
    )

    out = pl.pallas_call(
        kernel,
        out_shape=jax.ShapeDtypeStruct((ncores * _SUBLANES, _LANES), jnp.float32),
        grid_spec=pltpu.PrefetchScalarGridSpec(
            num_scalar_prefetch=0,
            grid=(ncores, tiles_per_core),
            in_specs=[
                pl.BlockSpec((tb, 2), x_map),    # merged side stream [h, idx bits]
                pl.BlockSpec((tb, C), x_map),    # X[0]
                pl.BlockSpec((tb, C), x_map),    # X[1]
            ],
            out_specs=pl.BlockSpec((_SUBLANES, _LANES), lambda p, i: (p, 0)),
        ),
        compiler_params=pltpu.CompilerParams(
            # TODO(synk): verify via xprof that this axis actually shards across
            # both TensorCores on v7x; if it serializes, switch to
            # pltpu.CORE_PARALLEL / pl.core_map over create_tensorcore_mesh.
            dimension_semantics=("parallel", "arbitrary"),
            vmem_limit_bytes=vmem_limit,
        ),
        cost_estimate=cost,
    )(side, X0, X1)

    partials = out.reshape(ncores, _SUBLANES, _LANES)[:, 0, 0]      # (ncores,)
    return jnp.sum(partials) / jnp.float32(B)


def tsp_loss_a_ref(output_S, output_D, X0, X1, targets):
    """Pure-JAX reference mirroring the PyTorch code."""
    idx = targets[:, 2].astype(jnp.int32)
    shallow = jnp.take_along_axis(X0, idx[:, None], axis=1)
    deep = jnp.take_along_axis(X1, idx[:, None], axis=1)
    upper = (shallow - deep - output_S + output_D) * (shallow > deep)
    down = (deep - shallow - output_D + output_S) * (deep >= shallow)
    return jnp.sum(jnp.maximum(upper + down, 0.0)) / output_S.shape[0]


if __name__ == "__main__":
    B, C = 16, 128  # batch, cls dim (small demo; the tiled design targets large B)

    key = jax.random.PRNGKey(0)
    k1, k2, k3, k4, k5 = jax.random.split(key, 5)

    output_S = jax.random.uniform(k1, (B, 1), dtype=jnp.float32)
    output_D = jax.random.uniform(k2, (B, 1), dtype=jnp.float32)
    X0 = jax.nn.softmax(jax.random.normal(k3, (B, C), dtype=jnp.float32), axis=-1)
    X1 = jax.nn.softmax(jax.random.normal(k4, (B, C), dtype=jnp.float32), axis=-1)
    # targets: (B, 3); only column 2 (class index) is used by this loss.
    cls_idx = jax.random.randint(k5, (B,), 0, C).astype(jnp.float32)
    targets = jnp.stack(
        [jnp.zeros((B,), jnp.float32), jnp.zeros((B,), jnp.float32), cls_idx], axis=1)

    loss = jax.block_until_ready(tsp_loss_a(output_S, output_D, X0, X1, targets))
    ref = jax.block_until_ready(tsp_loss_a_ref(output_S, output_D, X0, X1, targets))

    assert jnp.allclose(loss, ref, atol=1e-5, rtol=1e-5), (loss, ref)
    print("KERNEL_OK")
</pallas_src>

<mosaic_0001>
module attributes {stable_mosaic.version = 11 : i64} {
  func.func @_tsp_loss_a_kernel(%arg0: i32, %arg1: i32, %arg2: memref<16x2xf32, #tpu.memory_space<vmem>>, %arg3: memref<16x128xf32, #tpu.memory_space<vmem>>, %arg4: memref<16x128xf32, #tpu.memory_space<vmem>>, %arg5: memref<8x128xf32, #tpu.memory_space<vmem>>) attributes {dimension_semantics = [#tpu.dimension_semantics<parallel>, #tpu.dimension_semantics<arbitrary>], iteration_bounds = array<i64: 2, 1>, scalar_prefetch = 0 : i64, scratch_operands = 0 : i64, tpu.core_type = #tpu.core_type<tc>, window_params = [{transform_indices = @transform_0, window_bounds = array<i64: 16, 2>}, {transform_indices = @transform_1, window_bounds = array<i64: 16, 128>}, {transform_indices = @transform_2, window_bounds = array<i64: 16, 128>}, {transform_indices = @transform_3, window_bounds = array<i64: 8, 128>}]} {
    %c1_i32 = arith.constant 1 : i32
    %0 = arith.muli %arg0, %c1_i32 : i32
    %1 = arith.addi %0, %arg1 : i32
    %c0_i32 = arith.constant 0 : i32
    %2 = arith.cmpi eq, %arg1, %c0_i32 : i32
    %3 = arith.extui %2 : i1 to i32
    %c0_i32_0 = arith.constant 0 : i32
    %4 = arith.cmpi ne, %3, %c0_i32_0 : i32
    scf.if %4 {
      %cst_18 = arith.constant 0.000000e+00 : f32
      %44 = vector.broadcast %cst_18 : f32 to vector<8x128xf32>
      %c0_19 = arith.constant 0 : index
      %c0_20 = arith.constant 0 : index
      %45 = vector.load %arg5[%c0_19, %c0_20] : memref<8x128xf32, #tpu.memory_space<vmem>>, vector<8x128xf32>
      tpu.vector_store %arg5[%c0_19, %c0_20], %44 {strides = array<i32>} : memref<8x128xf32, #tpu.memory_space<vmem>>, vector<8x128xf32>,
    } else {
    }
    %c0 = arith.constant 0 : index
    %c0_1 = arith.constant 0 : index
    %5 = vector.load %arg2[%c0, %c0_1] : memref<16x2xf32, #tpu.memory_space<vmem>>, vector<16x1xf32>
    %c0_2 = arith.constant 0 : index
    %c1 = arith.constant 1 : index
    %6 = vector.load %arg2[%c0_2, %c1] : memref<16x2xf32, #tpu.memory_space<vmem>>, vector<16x1xf32>
    %7 = tpu.bitcast %6 : vector<16x1xf32> -> vector<16x1xi32>
    %8 = tpu.iota {dimensions = array<i32: 1>} : vector<16x128xi32>
    %c0_3 = arith.constant 0 : index
    %c0_4 = arith.constant 0 : index
    %9 = vector.load %arg3[%c0_3, %c0_4] : memref<16x128xf32, #tpu.memory_space<vmem>>, vector<16x128xf32>
    %c0_5 = arith.constant 0 : index
    %c0_6 = arith.constant 0 : index
    %10 = vector.load %arg4[%c0_5, %c0_6] : memref<16x128xf32, #tpu.memory_space<vmem>>, vector<16x128xf32>
    %11 = arith.subf %9, %10 : vector<16x128xf32>
    %12 = vector.broadcast %7 : vector<16x1xi32> to vector<16x128xi32>
    %13 = arith.cmpi eq, %8, %12 : vector<16x128xi32>
    %cst = arith.constant 0.000000e+00 : f32
    %14 = vector.broadcast %cst : f32 to vector<16x128xf32>
    %15 = arith.select %13, %11, %14 : vector<16x128xi1>, vector<16x128xf32>
    %cst_7 = arith.constant dense<0.000000e+00> : vector<16xf32>
    %16 = vector.multi_reduction <add>, %15, %cst_7 [1] : vector<16x128xf32> to vector<16xf32>
    %17 = vector.shape_cast %16 : vector<16xf32> to vector<16x1xf32>
    %cst_8 = arith.constant 0.000000e+00 : f32
    %18 = vector.broadcast %cst_8 : f32 to vector<16x1xf32>
    %19 = arith.cmpf ogt, %17, %18 : vector<16x1xf32>
    %20 = arith.subf %17, %5 : vector<16x1xf32>
    %21 = arith.subf %5, %17 : vector<16x1xf32>
    %22 = arith.select %19, %20, %21 : vector<16x1xi1>, vector<16x1xf32>
    %cst_9 = arith.constant 0.000000e+00 : f32
    %23 = vector.broadcast %cst_9 : f32 to vector<16x1xf32>
    %24 = arith.maximumf %22, %23 : vector<16x1xf32>
    %25 = tpu.iota {dimensions = array<i32: 0>} : vector<16x1xi32>
    %c16_i32 = arith.constant 16 : i32
    %26 = arith.muli %1, %c16_i32 : i32
    %27 = vector.broadcast %26 : i32 to vector<16x1xi32>
    %28 = arith.addi %27, %25 : vector<16x1xi32>
    %c16_i32_10 = arith.constant 16 : i32
    %29 = vector.broadcast %c16_i32_10 : i32 to vector<16x1xi32>
    %30 = arith.cmpi slt, %28, %29 : vector<16x1xi32>
    %c1_i32_11 = arith.constant 1 : i32
    %31 = arith.cmpi slt, %1, %c1_i32_11 : i32
    %32 = vector.broadcast %31 : i1 to vector<16x1xi1>
    %33 = arith.andi %30, %32 : vector<16x1xi1>
    %cst_12 = arith.constant 0.000000e+00 : f32
    %34 = vector.broadcast %cst_12 : f32 to vector<16x1xf32>
    %35 = arith.select %33, %24, %34 : vector<16x1xi1>, vector<16x1xf32>
    %c0_13 = arith.constant 0 : index
    %c0_14 = arith.constant 0 : index
    %36 = vector.load %arg5[%c0_13, %c0_14] : memref<8x128xf32, #tpu.memory_space<vmem>>, vector<8x128xf32>
    %37 = vector.shape_cast %35 : vector<16x1xf32> to vector<1x16x1xf32>
    %cst_15 = arith.constant dense<0.000000e+00> : vector<1xf32>
    %38 = vector.multi_reduction <add>, %37, %cst_15 [1, 2] : vector<1x16x1xf32> to vector<1xf32>
    %39 = vector.shape_cast %38 : vector<1xf32> to vector<1x1x1xf32>
    %40 = vector.extract %39[0, 0, 0] : f32 from vector<1x1x1xf32>
    %41 = vector.broadcast %40 : f32 to vector<8x128xf32>
    %42 = arith.addf %36, %41 : vector<8x128xf32>
    %c0_16 = arith.constant 0 : index
    %c0_17 = arith.constant 0 : index
    %43 = vector.load %arg5[%c0_16, %c0_17] : memref<8x128xf32, #tpu.memory_space<vmem>>, vector<8x128xf32>
    tpu.vector_store %arg5[%c0_16, %c0_17], %42 {strides = array<i32>} : memref<8x128xf32, #tpu.memory_space<vmem>>, vector<8x128xf32>,
    return
  }
  func.func @transform_0(%arg0: i32, %arg1: i32) -> (i32, i32) {
    %c1_i32 = arith.constant 1 : i32
    %0 = arith.muli %arg0, %c1_i32 : i32
    %1 = arith.addi %0, %arg1 : i32
    %c0_i32 = arith.constant 0 : i32
    %2 = arith.minsi %1, %c0_i32 : i32
    %c0_i32_0 = arith.constant 0 : i32
    %c0_i32_1 = arith.constant 0 : i32
    return %2, %c0_i32_0 : i32, i32
  }
  func.func @transform_1(%arg0: i32, %arg1: i32) -> (i32, i32) {
    %c1_i32 = arith.constant 1 : i32
    %0 = arith.muli %arg0, %c1_i32 : i32
    %1 = arith.addi %0, %arg1 : i32
    %c0_i32 = arith.constant 0 : i32
    %2 = arith.minsi %1, %c0_i32 : i32
    %c0_i32_0 = arith.constant 0 : i32
    %c0_i32_1 = arith.constant 0 : i32
    return %2, %c0_i32_0 : i32, i32
  }
  func.func @transform_2(%arg0: i32, %arg1: i32) -> (i32, i32) {
    %c1_i32 = arith.constant 1 : i32
    %0 = arith.muli %arg0, %c1_i32 : i32
    %1 = arith.addi %0, %arg1 : i32
    %c0_i32 = arith.constant 0 : i32
    %2 = arith.minsi %1, %c0_i32 : i32
    %c0_i32_0 = arith.constant 0 : i32
    %c0_i32_1 = arith.constant 0 : i32
    return %2, %c0_i32_0 : i32, i32
  }
  func.func @transform_3(%arg0: i32, %arg1: i32) -> (i32, i32) {
    %c0_i32 = arith.constant 0 : i32
    %c0_i32_0 = arith.constant 0 : i32
    return %arg0, %c0_i32 : i32, i32
  }
}

</mosaic_0001>

<llo_original>
// kernel: tpu_custom_call.1
$region0: #{tpu_custom_call.1}
  #allocation0 [shape = 'u32[]', space=smem, size = 0x4, offset = 0x4, fixed_abs, tag = 'smem constant byte address 0x4 - core index']
  #allocation1 [shape = 'u32[72,128]{1,0:T(1,128)}', space=vmem, size = 0x9000, scoped, tag = 'internal scratch']
  %s0 = inlined_call_operand.vmem [shape: f32[16,2], index: 0, kind: input, shape index: {}]
  %s1 = inlined_call_operand.vmem [shape: f32[16,128], index: 1, kind: input, shape index: {}]
  %s2 = inlined_call_operand.hbm [shape: f32[16,128], index: 2, kind: input, shape index: {}]
  %s3 = inlined_call_operand.hbm [shape: f32[16,128], index: 3, kind: output, shape index: {}]
  %s4 = sld [smem:[#allocation0]]
  $region53: #{tpu_custom_call.1} parent=0
    _
  %s6 = ssub.s32 1, %s4
  %s7 = scalar_select 0, %s6, %s4
  $region1: #{tpu_custom_call.1} parent=0
    #allocation2 [shape = 'u8[16384]{0}', space=vmem, size = 0x4000, scoped, tag = 'input window, operand 2']
    #allocation3 [shape = 's32[2]{0}', space=sflag, size = 0x8, scoped, tag = 'scoped memory for tpu_custom_call.1']
    #allocation4 [shape = 's32[2]{0}', space=sflag, size = 0x8, scoped, tag = 'scoped memory for tpu_custom_call.1']
    #allocation5 [shape = 'u8[8192]{0}', space=vmem, size = 0x2000, scoped, tag = 'output window, operand 0']
    %8 = vsyncpa [#allocation3], 0
    %s9 = scalar_lea.sflag [#allocation3], 1
    %10 = vsyncpa %s9, 0
    %11 = vsyncpa [#allocation4], 0
    %s12 = scalar_lea.sflag [#allocation4], 1
    %13 = vsyncpa %s12, 0
    loop: start=0, step=1, limit=4
    $region2: #{tpu_custom_call.1} parent=1 // loop_pre_header
      _
    $region3: #{tpu_custom_call.1} parent=1 // loop_header
      %s15 = sphi 0, %s19
      %p16 = scmp.ge.s32.totalorder %s15, 4
      %s22 = sphi 0, %s34
      %s23 = sphi 0, %s30
      %s24 = sphi 0, %s22
      %s25 = sphi 0, %s23
      %s26 = sphi 0, %s24
      %s27 = sphi 0, %s25
      %s43 = sphi 0, %s45
      %s46 = sphi 0, %s43
      %s47 = sphi 0, %s46
      %s63 = sphi 0, %s47
      %s75 = sphi 0, %s77
      %s78 = sphi 0, %s75
      %s79 = sphi 0, %s78
      %s95 = sphi 0, %s79
      %s107 = sphi 0, %s109
      %s110 = sphi 0, %s107
      %s111 = sphi 0, %s110
      %s127 = sphi 0, %s111
      %s133 = sphi 0, %s135
      %s136 = sphi 0, %s133
      %s137 = sphi 0, %s136
      %s153 = sphi 0, %s137
    $region4: #{tpu_custom_call.1} parent=1 // loop_header_branch
      %18 = sbr.rel (%p16) target = $region8
    $region5: #{tpu_custom_call.1} parent=1 // loop_body
      %s20 = ssub.s32 %s15, 1
      %s21 = ssub.s32 %s15, 2
      %s28 = sadd.s32 1, %s23
      %p29 = scmp.ge.s32.totalorder %s28, 1
      %s30 = scalar_select %p29, 0, %s28
      %s31 = sadd.s32 1, %s22
      %s32 = scalar_select %p29, %s31, %s22
      %p33 = scmp.ge.s32.totalorder %s32, 2
      %s34 = scalar_select %p33, 0, %s32
      %s35 = sadd.s32 %s22, %s23
      %p36 = scmp.lt.s32.totalorder %s35, 0
      %s37 = scalar_select %p36, %s35, 0
      %s38 = sadd.s32 %s34, %s30
      %p39 = scmp.lt.s32.totalorder %s38, 0
      %s40 = scalar_select %p39, %s38, 0
      %s41 = ssub.s32 %s37, %s40
      %p42 = scmp.eq.s32.totalorder %s41, 0
      %s44 = sadd.s32 %s43, 1
      %s45 = scalar_select %p42, %s43, %s44
      %p48 = pneg %p42
      %p49 = scmp.eq.s32.totalorder %s15, 1
      %p50 = por %p48, %p49
      %p51 = scmp.ne.s32.totalorder %s43, %s46
      %p52 = scmp.eq.s32.totalorder %s15, 0
      %p53 = por %p51, %p52
      %p54 = scmp.ne.s32.totalorder %s43, %s46
      %p55 = scmp.eq.s32.totalorder %s20, 1
      %p56 = por %p54, %p55
      %p57 = scmp.ne.s32.totalorder %s46, %s47
      %p58 = scmp.eq.s32.totalorder %s20, 0
      %p59 = por %p57, %p58
      %p60 = scmp.ne.s32.totalorder %s46, %s47
      %p61 = scmp.eq.s32.totalorder %s21, 1
      %p62 = por %p60, %p61
      %p64 = scmp.ne.s32.totalorder %s47, %s63
      %p65 = scmp.eq.s32.totalorder %s21, 0
      %p66 = por %p64, %p65
      %s67 = sadd.s32 %s22, %s23
      %p68 = scmp.lt.s32.totalorder %s67, 0
      %s69 = scalar_select %p68, %s67, 0
      %s70 = sadd.s32 %s34, %s30
      %p71 = scmp.lt.s32.totalorder %s70, 0
      %s72 = scalar_select %p71, %s70, 0
      %s73 = ssub.s32 %s69, %s72
      %p74 = scmp.eq.s32.totalorder %s73, 0
      %s76 = sadd.s32 %s75, 1
      %s77 = scalar_select %p74, %s75, %s76
      %p80 = pneg %p74
      %p81 = scmp.eq.s32.totalorder %s15, 1
      %p82 = por %p80, %p81
      %p83 = scmp.ne.s32.totalorder %s75, %s78
      %p84 = scmp.eq.s32.totalorder %s15, 0
      %p85 = por %p83, %p84
      %p86 = scmp.ne.s32.totalorder %s75, %s78
      %p87 = scmp.eq.s32.totalorder %s20, 1
      %p88 = por %p86, %p87
      %p89 = scmp.ne.s32.totalorder %s78, %s79
      %p90 = scmp.eq.s32.totalorder %s20, 0
      %p91 = por %p89, %p90
      %p92 = scmp.ne.s32.totalorder %s78, %s79
      %p93 = scmp.eq.s32.totalorder %s21, 1
      %p94 = por %p92, %p93
      %p96 = scmp.ne.s32.totalorder %s79, %s95
      %p97 = scmp.eq.s32.totalorder %s21, 0
      %p98 = por %p96, %p97
      %s99 = sadd.s32 %s22, %s23
      %p100 = scmp.lt.s32.totalorder %s99, 0
      %s101 = scalar_select %p100, %s99, 0
      %s102 = sadd.s32 %s34, %s30
      %p103 = scmp.lt.s32.totalorder %s102, 0
      %s104 = scalar_select %p103, %s102, 0
      %s105 = ssub.s32 %s101, %s104
      %p106 = scmp.eq.s32.totalorder %s105, 0
      %s108 = sadd.s32 %s107, 1
      %s109 = scalar_select %p106, %s107, %s108
      %p112 = pneg %p106
      %p113 = scmp.eq.s32.totalorder %s15, 1
      %p114 = por %p112, %p113
      %p115 = scmp.ne.s32.totalorder %s107, %s110
      %p116 = scmp.eq.s32.totalorder %s15, 0
      %p117 = por %p115, %p116
      %p118 = scmp.ne.s32.totalorder %s107, %s110
      %p119 = scmp.eq.s32.totalorder %s20, 1
      %p120 = por %p118, %p119
      %p121 = scmp.ne.s32.totalorder %s110, %s111
      %p122 = scmp.eq.s32.totalorder %s20, 0
      %p123 = por %p121, %p122
      %p124 = scmp.ne.s32.totalorder %s110, %s111
      %p125 = scmp.eq.s32.totalorder %s21, 1
      %p126 = por %p124, %p125
      %p128 = scmp.ne.s32.totalorder %s111, %s127
      %p129 = scmp.eq.s32.totalorder %s21, 0
      %p130 = por %p128, %p129
      %s131 = ssub.s32 %s22, %s34
      %p132 = scmp.eq.s32.totalorder %s131, 0
      %s134 = sadd.s32 %s133, 1
      %s135 = scalar_select %p132, %s133, %s134
      %p138 = pneg %p132
      %p139 = scmp.eq.s32.totalorder %s15, 1
      %p140 = por %p138, %p139
      %p141 = scmp.ne.s32.totalorder %s133, %s136
      %p142 = scmp.eq.s32.totalorder %s15, 0
      %p143 = por %p141, %p142
      %p144 = scmp.ne.s32.totalorder %s133, %s136
      %p145 = scmp.eq.s32.totalorder %s20, 1
      %p146 = por %p144, %p145
      %p147 = scmp.ne.s32.totalorder %s136, %s137
      %p148 = scmp.eq.s32.totalorder %s20, 0
      %p149 = por %p147, %p148
      %p150 = scmp.ne.s32.totalorder %s136, %s137
      %p151 = scmp.eq.s32.totalorder %s21, 1
      %p152 = por %p150, %p151
      %p154 = scmp.ne.s32.totalorder %s137, %s153
      %p155 = scmp.eq.s32.totalorder %s21, 0
      %p156 = por %p154, %p155
      %p157 = scmp.le.s32.totalorder 1, %s15
      %p158 = scmp.lt.s32.totalorder %s15, 3
      %p159 = pnand %p157, %p158
      %p160 = pneg %p159
      // Predicated region
      $region9: #{tpu_custom_call.1} parent=5 // pred_check
        _
      $region10: #{tpu_custom_call.1} parent=5 // pred_check_branch
        %162 = sbr.rel (%p159) target = $region12
      $region11: #{tpu_custom_call.1} parent=5 // pred_region
        %s163 = ssub.s32 %s15, 1
      $region12: #{tpu_custom_call.1} parent=5 // pred_fallthru
        _
      %p164 = scmp.lt.s32.totalorder %s15, 2
      // Predicated region
      $region13: #{tpu_custom_call.1} parent=5 // pred_check
        %p165 = pneg %p164
      $region14: #{tpu_custom_call.1} parent=5 // pred_check_branch
        %167 = sbr.rel (%p165) target = $region16
      $region15: #{tpu_custom_call.1} parent=5 // pred_region
        // Predicated region
        $region17: #{tpu_custom_call.1} parent=15 // pred_check
          %p168 = pneg %p53
        $region18: #{tpu_custom_call.1} parent=15 // pred_check_branch
          %170 = sbr.rel (%p168) target = $region20
        $region19: #{tpu_custom_call.1} parent=15 // pred_region
          %s171 = sadd.s32 %s22, %s23
          %p172 = scmp.lt.s32.totalorder %s171, 0
          %s173 = scalar_select %p172, %s171, 0
          %s174 = smul.u32 2, %s173
          %p175 = scmp.lt.s32.totalorder %s174, 1
          %s176 = scalar_select %p175, %s174, 1
          %s177 = smul.addr %s176, 8
          %s178 = scalar_lea.vmem %s0, %s177
          %s179 = sadd.s32 %s22, %s23
          %p180 = scmp.lt.s32.totalorder %s179, 0
          %s181 = scalar_select %p180, %s179, 0
          %s182 = smul.u32 2, %s181
        $region20: #{tpu_custom_call.1} parent=15 // pred_fallthru
          _
        // Predicated region
        $region21: #{tpu_custom_call.1} parent=15 // pred_check
          %p183 = pneg %p85
        $region22: #{tpu_custom_call.1} parent=15 // pred_check_branch
          %185 = sbr.rel (%p183) target = $region24
        $region23: #{tpu_custom_call.1} parent=15 // pred_region
          %s186 = sadd.s32 %s22, %s23
          %p187 = scmp.lt.s32.totalorder %s186, 0
          %s188 = scalar_select %p187, %s186, 0
          %s189 = smul.u32 2, %s188
          %p190 = scmp.lt.s32.totalorder %s189, 1
          %s191 = scalar_select %p190, %s189, 1
          %s192 = smul.addr %s191, 8
          %s193 = scalar_lea.vmem %s1, %s192
          %s194 = sadd.s32 %s22, %s23
          %p195 = scmp.lt.s32.totalorder %s194, 0
          %s196 = scalar_select %p195, %s194, 0
          %s197 = smul.u32 2, %s196
        $region24: #{tpu_custom_call.1} parent=15 // pred_fallthru
          _
        // Predicated region
        $region25: #{tpu_custom_call.1} parent=15 // pred_check
          %p198 = pneg %p117
        $region26: #{tpu_custom_call.1} parent=15 // pred_check_branch
          %200 = sbr.rel (%p198) target = $region28
        $region27: #{tpu_custom_call.1} parent=15 // pred_region
          %s201 = sand.u32 %s107, 1
          %s202 = scalar_lea.sflag [#allocation3], %s201
          %s203 = sand.u32 %s107, 1
          %s204 = smul.addr %s203, 16
          %s205 = scalar_lea.vmem [#allocation2], %s204
          %s206 = sadd.s32 %s22, %s23
          %p207 = scmp.lt.s32.totalorder %s206, 0
          %s208 = scalar_select %p207, %s206, 0
          %s209 = smul.u32 2, %s208
          %211 = vsyncadd %s202, 0
          %s212 = smul.addr %s209, 8
          %s213 = scalar_lea.hbm %s2, %s212
          %s214 = sshll.u32 %s213, 4
          %s215 = int_to_ptr.hbm [resolvable:$true] %s214
          %s216 = sshll.u32 %s205, 4
          %s217 = int_to_ptr.vmem [resolvable:$true] %s216
          %222 = dma.hbm_to_vmem [thread:$0]  %s215, 256, %s217, %s202, 128, 128, 8
        $region28: #{tpu_custom_call.1} parent=15 // pred_fallthru
          _
      $region16: #{tpu_custom_call.1} parent=5 // pred_fallthru
        _
      %p223 = scmp.le.s32.totalorder 1, %s15
      %p224 = scmp.lt.s32.totalorder %s15, 3
      %p225 = pnand %p223, %p224
      %p226 = pneg %p225
      // Predicated region
      $region29: #{tpu_custom_call.1} parent=5 // pred_check
        _
      $region30: #{tpu_custom_call.1} parent=5 // pred_check_branch
        %228 = sbr.rel (%p225) target = $region32
      $region31: #{tpu_custom_call.1} parent=5 // pred_region
        %s229 = ssub.s32 %s15, 1
        %s230 = sand.u32 %s110, 1
        %s231 = scalar_lea.sflag [#allocation3], %s230
        %s232 = sand.u32 %s110, 1
        %s233 = smul.addr %s232, 16
        %s234 = scalar_lea.vmem [#allocation2], %s233
        // Predicated region
        $region33: #{tpu_custom_call.1} parent=31 // pred_check
          %p235 = pneg %p123
        $region34: #{tpu_custom_call.1} parent=31 // pred_check_branch
          %237 = sbr.rel (%p235) target = $region36
        $region35: #{tpu_custom_call.1} parent=31 // pred_region
          %239 = dma.done %s231, 256
        $region36: #{tpu_custom_call.1} parent=31 // pred_fallthru
          _
        %s240 = sadd.s32 %s24, %s25
        %p241 = scmp.lt.s32.totalorder %s240, 0
        %s242 = scalar_select %p241, %s240, 0
        %s243 = smul.u32 2, %s242
        %p244 = scmp.lt.s32.totalorder %s243, 1
        %s245 = scalar_select %p244, %s243, 1
        %s246 = smul.addr %s245, 8
        %s247 = scalar_lea.vmem %s0, %s246
        %p248 = pneg %p59
        %p249 = pneg %p56
        %s250 = sadd.s32 %s24, %s25
        %p251 = scmp.lt.s32.totalorder %s250, 0
        %s252 = scalar_select %p251, %s250, 0
        %s253 = smul.u32 2, %s252
        %p254 = scmp.lt.s32.totalorder %s253, 1
        %s255 = scalar_select %p254, %s253, 1
        %s256 = smul.addr %s255, 8
        %s257 = scalar_lea.vmem %s1, %s256
        %p258 = pneg %p91
        %p259 = pneg %p88
        %s260 = sand.u32 %s110, 1
        %s261 = scalar_lea.sflag [#allocation3], %s260
        %s262 = sand.u32 %s110, 1
        %s263 = smul.addr %s262, 16
        %s264 = scalar_lea.vmem [#allocation2], %s263
        %p265 = pneg %p123
        %p266 = pneg %p120
        %p267 = pneg %p149
        %p268 = pneg %p146
        %s269 = sand.u32 %s136, 1
        %s270 = scalar_lea.sflag [#allocation4], %s269
        %s271 = sand.u32 %s136, 1
        %s272 = smul.addr %s271, 8
        %s273 = scalar_lea.vmem [#allocation5], %s272
        %s274 = sadd.s32 %s24, %s25
        %p275 = scmp.lt.s32.totalorder %s274, 0
        %s276 = scalar_select %p275, %s274, 0
        %s277 = smul.u32 2, %s276
        %p278 = scmp.lt.s32.totalorder %s277, 1
        %s279 = scalar_select %p278, %s277, 1
        %s280 = smul.addr %s279, 8
        %s281 = scalar_lea.vmem %s0, %s280
        %s282 = sadd.s32 %s24, %s25
        %p283 = scmp.lt.s32.totalorder %s282, 0
        %s284 = scalar_select %p283, %s282, 0
        %s285 = smul.u32 2, %s284
        %s286 = sadd.s32 %s24, %s25
        %p287 = scmp.lt.s32.totalorder %s286, 0
        %s288 = scalar_select %p287, %s286, 0
        %s289 = smul.u32 2, %s288
        %p290 = scmp.lt.s32.totalorder %s289, 1
        %s291 = scalar_select %p290, %s289, 1
        %s292 = smul.addr %s291, 8
        %s293 = scalar_lea.vmem %s1, %s292
        %s294 = sadd.s32 %s24, %s25
        %p295 = scmp.lt.s32.totalorder %s294, 0
        %s296 = scalar_select %p295, %s294, 0
        %s297 = smul.u32 2, %s296
        %s298 = sadd.s32 %s24, %s25
        %p299 = scmp.lt.s32.totalorder %s298, 0
        %s300 = scalar_select %p299, %s298, 0
        %s301 = smul.u32 2, %s300
        %s302 = sadd.s32 %s24, %s25
        %p303 = scmp.eq.s32.totalorder %s25, 0
        // Predicated region
        $region37: #{tpu_custom_call.1} parent=31 // pred_check
          %p304 = pneg %p303
        $region38: #{tpu_custom_call.1} parent=31 // pred_check_branch
          %306 = sbr.rel (%p304) target = $region40
        $region39: #{tpu_custom_call.1} parent=31 // pred_region
          %307 = vst [vmem:[%s273] sm:$0xff] 0.0
        $region40: #{tpu_custom_call.1} parent=31 // pred_fallthru
          _
        %v308 = vld [vmem:[%s281] sm:$0xff]
        %v309 = vld [vmem:[%s281 + $0x8] sm:$0xff]
        %v312 = vlaneseq
        %v313 = vand.u32 %v312, 127
        %v314 = vld [vmem:[%s293] sm:$0xff]
        %v315 = vld [vmem:[%s293 + $0x8] sm:$0xff]
        %v316 = vld [vmem:[%s234] sm:$0xff]
        %v317 = vld [vmem:[%s234 + $0x8] sm:$0xff]
        %v318 = vsub.f32 %v314, %v316
        %v319 = vsub.f32 %v315, %v317
        %320 = vset.pattern.permute.xlu0 1
        %321 = vperm.xlu0 %320, %v308
        %v322 = vpop.permute.xlu0 %321
        %323 = vset.pattern.permute.xlu0 1
        %324 = vperm.xlu0 %323, %v309
        %v325 = vpop.permute.xlu0 %324
        %vm326 = vcmp.eq.s32.totalorder %v313, %v322
        %vm327 = vcmp.eq.s32.totalorder %v313, %v325
        %v328 = vsel %vm326, %v318, 0.0
        %v329 = vsel %vm327, %v319, 0.0
        %330 = vadd.xlane.f32.xlu0 %v328
        %v331 = vpop.xlane.xlu0 %330
        %332 = vadd.xlane.f32.xlu0 %v329
        %v333 = vpop.xlane.xlu0 %332
        %vm334 = vcmp.gt.f32.partialorder %v331, 0.0
        %vm335 = vcmp.gt.f32.partialorder %v333, 0.0
        %v336 = vsub.f32 %v331, %v308
        %v337 = vsub.f32 %v333, %v309
        %v338 = vsub.f32 %v308, %v331
        %v339 = vsub.f32 %v309, %v333
        %v340 = vsel %vm334, %v336, %v338
        %v341 = vsel %vm335, %v337, %v339
        %v342 = vmax.f32 %v340, 0.0
        %v343 = vmax.f32 %v341, 0.0
        %v344 = vlaneseq
        %v345 = vshrl.u32 %v344, 7
        %v346 = vadd.s32 %v345, 8
        %s347 = smul.u32 %s302, 16
        %v348 = vstv %s347
        %v349 = vadd.s32 %v348, %v345
        %v350 = vadd.s32 %v348, %v346
        %vm351 = vcmp.lt.s32.totalorder %v349, 16
        %vm352 = vcmp.lt.s32.totalorder %v350, 16
        %p353 = scmp.lt.s32.totalorder %s302, 1
        %s354 = scalar_select %p353, 1, 0
        %v355 = vstv %s354
        %vm356 = vcmp.eq.s32.totalorder %v355, 1
        %vm357 = vmand %vm351, %vm356
        %vm358 = vmand %vm352, %vm356
        %v359 = vsel %vm357, %v342, 0.0
        %v360 = vsel %vm358, %v343, 0.0
        %v361 = vld [vmem:[%s273] sm:$0xff]
        %vm362 = vcmask 7168
        %v363 = vsel %vm362, %v359, 0.0
        %v364 = vsel %vm362, %v360, 0.0
        %v365 = vadd.f32 %v363, %v364
        %366 = vadd.xlane.f32.xlu0 %v365
        %v367 = vpop.xlane.xlu0 %366
        %v368 = vrot.slane %v367, 4
        %v369 = vadd.f32 %v367, %v368
        %v370 = vrot.slane %v369, 2
        %v371 = vadd.f32 %v369, %v370
        %v372 = vrot.slane %v371, 1
        %v373 = vadd.f32 %v371, %v372
        %s374 = vtos %v373
        %v375 = vstv %s374
        %v376 = vadd.f32 %v361, %v375
        %377 = vst [vmem:[%s273] sm:$0xff] %v376
        %s378 = sand.u32 %s136, 1
        %s379 = scalar_lea.sflag [#allocation4], %s378
        %s380 = sand.u32 %s136, 1
        %s381 = smul.addr %s380, 8
        %s382 = scalar_lea.vmem [#allocation5], %s381
        // Predicated region
        $region41: #{tpu_custom_call.1} parent=31 // pred_check
          %p383 = pneg %p146
        $region42: #{tpu_custom_call.1} parent=31 // pred_check_branch
          %385 = sbr.rel (%p383) target = $region44
        $region43: #{tpu_custom_call.1} parent=31 // pred_region
          %387 = vsyncadd %s379, 0
          %s388 = smul.addr %s24, 8
          %s389 = scalar_lea.hbm %s3, %s388
          %s391 = sshll.u32 %s382, 4
          %s392 = int_to_ptr.vmem [resolvable:$true] %s391
          %s393 = sshll.u32 %s389, 4
          %s394 = int_to_ptr.hbm [resolvable:$true] %s393
          %396 = dma.vmem_to_hbm [thread:$0]  %s392, 128, %s394, %s379
        $region44: #{tpu_custom_call.1} parent=31 // pred_fallthru
          _
      $region32: #{tpu_custom_call.1} parent=5 // pred_fallthru
        _
      %p397 = scmp.le.s32.totalorder 2, %s15
      // Predicated region
      $region45: #{tpu_custom_call.1} parent=5 // pred_check
        %p398 = pneg %p397
      $region46: #{tpu_custom_call.1} parent=5 // pred_check_branch
        %400 = sbr.rel (%p398) target = $region48
      $region47: #{tpu_custom_call.1} parent=5 // pred_region
        %s401 = ssub.s32 %s15, 2
        // Predicated region
        $region49: #{tpu_custom_call.1} parent=47 // pred_check
          %p402 = pneg %p152
        $region50: #{tpu_custom_call.1} parent=47 // pred_check_branch
          %404 = sbr.rel (%p402) target = $region52
        $region51: #{tpu_custom_call.1} parent=47 // pred_region
          %s405 = sand.u32 %s137, 1
          %s406 = scalar_lea.sflag [#allocation4], %s405
          %s407 = sand.u32 %s137, 1
          %s408 = smul.addr %s407, 8
          %s409 = scalar_lea.vmem [#allocation5], %s408
          %411 = dma.done %s406, 128
        $region52: #{tpu_custom_call.1} parent=47 // pred_fallthru
          _
      $region48: #{tpu_custom_call.1} parent=5 // pred_fallthru
        _
    $region6: #{tpu_custom_call.1} parent=1 // loop_footer
      %s19 = sadd.s32 1, %s15
    $region7: #{tpu_custom_call.1} parent=1 // loop_footer_branch
      %14 = sbr.rel target = $region3
    $region8: #{tpu_custom_call.1} parent=1 // loop_exit
      _
    %412 = vsyncpa [#allocation3], 1
    %s413 = scalar_lea.sflag [#allocation3], 1
    %414 = vsyncpa %s413, 1
    %415 = vsyncpa [#allocation4], 1
    %s416 = scalar_lea.sflag [#allocation4], 1
    %417 = vsyncpa %s416, 1

</llo_original>
